<compile_context>
chip_gen: v7x
topology: tpu7x:2x2x1
jax: 0.10.0
libtpu: 0.0.40
codegen_flags: <defaults>
</compile_context>

<pallas_src>
import functools

import jax
import jax.numpy as jnp
from jax.experimental import pallas as pl
from jax.experimental.pallas import tpu as pltpu


def _round_up(x, m):
    return ((x + m - 1) // m) * m


def _mlp_sum_kernel(q_ref, k_ref, v_ref, w1_ref, b1_ref, w2_ref, b2x3_ref, o_ref):
    """out = relu(stack(q,k,v) @ W1 + b1) summed over {q,k,v} rows, then @ W2 + 3*b2."""
    tm = q_ref.shape[0]

    # One stacked first-layer matmul instead of three tiny ones.
    x = jnp.concatenate([q_ref[...], k_ref[...], v_ref[...]], axis=0)   # (3*tm, E)
    h = jnp.dot(x, w1_ref[...], preferred_element_type=jnp.float32)     # (3*tm, H)
    h = jnp.maximum(h + b1_ref[...], 0.0)                                # bias added once

    # fc2 is affine -> sum the three row groups first, do ONE second matmul.
    h_sum = h[:tm, :] + h[tm:2 * tm, :] + h[2 * tm:, :]                  # (tm, H)

    out = jnp.dot(h_sum, w2_ref[...], preferred_element_type=jnp.float32)
    out = out + b2x3_ref[...]                                            # 3*b2, folded in wrapper
    o_ref[...] = out.astype(o_ref.dtype)


@functools.partial(jax.jit, static_argnames=("tm_max",))
def mlp_module_forward(query, key, value, params, *, tm_max=256):
    """query/key/value: (B, S, E) float32. params: dict of w1 (E,2E), b1 (2E,), w2 (2E,E), b2 (E,)."""
    B, S, E = query.shape
    H = params["w1"].shape[1]        # = 2 * E
    N = B * S

    # Lane-dense padding (last dims -> multiples of 128).
    E_pad = _round_up(E, 128)
    H_pad = _round_up(H, 128)

    # Row tile: for small problems use a single tile (launch-overhead bound,
    # don't over-tile); for large N use tm_max (multiple of 128 -> MXU width).
    if N <= tm_max:
        tm = _round_up(N, 8)
    else:
        tm = tm_max
    N_pad = _round_up(N, tm)
    grid = (N_pad // tm,)

    def pad2(x, rows, cols):
        return jnp.pad(x, ((0, rows - x.shape[0]), (0, cols - x.shape[1])))

    q2 = pad2(query.reshape(N, E), N_pad, E_pad)
    k2 = pad2(key.reshape(N, E), N_pad, E_pad)
    v2 = pad2(value.reshape(N, E), N_pad, E_pad)

    w1 = pad2(params["w1"], E_pad, H_pad)                       # (E_pad, H_pad)
    b1 = pad2(params["b1"].reshape(1, H), 1, H_pad)             # (1, H_pad)
    w2 = pad2(params["w2"], H_pad, E_pad)                       # (H_pad, E_pad)
    b2x3 = pad2((3.0 * params["b2"]).reshape(1, E), 1, E_pad)   # (1, E_pad) epilogue bias

    # VMEM budget: double-buffered activation tiles + resident weights +
    # in-kernel temporaries; 2x headroom, capped well under v7x's 64 MiB.
    f32 = 4
    io_bytes = f32 * 2 * (3 * tm * E_pad + tm * E_pad)
    w_bytes = f32 * 2 * (E_pad * H_pad + H_pad + H_pad * E_pad + E_pad)
    tmp_bytes = f32 * (3 * tm * E_pad + 3 * tm * H_pad + tm * H_pad + tm * E_pad)
    vmem_limit = int(min(max(2 * (io_bytes + w_bytes + tmp_bytes), 8 << 20), 48 << 20))

    out = pl.pallas_call(
        _mlp_sum_kernel,
        out_shape=jax.ShapeDtypeStruct((N_pad, E_pad), query.dtype),
        grid_spec=pltpu.PrefetchScalarGridSpec(
            num_scalar_prefetch=0,
            grid=grid,
            in_specs=[
                pl.BlockSpec((tm, E_pad), lambda i: (i, 0)),      # q tile
                pl.BlockSpec((tm, E_pad), lambda i: (i, 0)),      # k tile
                pl.BlockSpec((tm, E_pad), lambda i: (i, 0)),      # v tile
                pl.BlockSpec((E_pad, H_pad), lambda i: (0, 0)),   # w1 (resident)
                pl.BlockSpec((1, H_pad), lambda i: (0, 0)),       # b1 (resident)
                pl.BlockSpec((H_pad, E_pad), lambda i: (0, 0)),   # w2 (resident)
                pl.BlockSpec((1, E_pad), lambda i: (0, 0)),       # 3*b2 (resident)
            ],
            out_specs=pl.BlockSpec((tm, E_pad), lambda i: (i, 0)),
        ),
        compiler_params=pltpu.CompilerParams(
            dimension_semantics=("parallel",),
            vmem_limit_bytes=vmem_limit,
        ),
    )(q2, k2, v2, w1, b1, w2, b2x3)

    return out[:N, :E].reshape(B, S, E)


def init_params(key, embed_dim):
    """Deterministic init mirroring nn.Linear shapes (stored transposed as (in, out))."""
    hidden = embed_dim * 2
    k1, k2, k3, k4 = jax.random.split(key, 4)
    bound1 = 1.0 / (embed_dim ** 0.5)
    w1 = jax.random.uniform(k1, (embed_dim, hidden), jnp.float32, -bound1, bound1)
    b1 = jax.random.uniform(k2, (hidden,), jnp.float32, -bound1, bound1)
    bound2 = 1.0 / (hidden ** 0.5)
    w2 = jax.random.uniform(k3, (hidden, embed_dim), jnp.float32, -bound2, bound2)
    b2 = jax.random.uniform(k4, (embed_dim,), jnp.float32, -bound2, bound2)
    return {"w1": w1, "b1": b1, "w2": w2, "b2": b2}


def _reference(query, key, value, params):
    def mlp(x):
        h = jnp.maximum(x @ params["w1"] + params["b1"], 0.0)
        return h @ params["w2"] + params["b2"]
    return mlp(query) + mlp(key) + mlp(value)


if __name__ == "__main__":
    B, S, E = 2, 8, 32
    root = jax.random.PRNGKey(0)
    kp, kq, kk, kv = jax.random.split(root, 4)

    params = init_params(kp, E)
    query = jax.random.normal(kq, (B, S, E), jnp.float32)
    key = jax.random.normal(kk, (B, S, E), jnp.float32)
    value = jax.random.normal(kv, (B, S, E), jnp.float32)

    out = mlp_module_forward(query, key, value, params)
    out = jax.block_until_ready(out)

    ref = _reference(query, key, value, params)
    assert out.shape == (B, S, E)
    assert jnp.allclose(out, ref, atol=1e-4, rtol=1e-4)

    print("KERNEL_OK")
</pallas_src>

<mosaic_0001>
module attributes {stable_mosaic.version = 11 : i64} {
  func.func @_mlp_sum_kernel(%arg0: i32, %arg1: memref<16x128xf32, #tpu.memory_space<vmem>>, %arg2: memref<16x128xf32, #tpu.memory_space<vmem>>, %arg3: memref<16x128xf32, #tpu.memory_space<vmem>>, %arg4: memref<128x128xf32, #tpu.memory_space<vmem>>, %arg5: memref<1x128xf32, #tpu.memory_space<vmem>>, %arg6: memref<128x128xf32, #tpu.memory_space<vmem>>, %arg7: memref<1x128xf32, #tpu.memory_space<vmem>>, %arg8: memref<16x128xf32, #tpu.memory_space<vmem>>) attributes {dimension_semantics = [#tpu.dimension_semantics<parallel>], iteration_bounds = array<i64: 1>, scalar_prefetch = 0 : i64, scratch_operands = 0 : i64, tpu.core_type = #tpu.core_type<tc>, window_params = [{transform_indices = @transform_0, window_bounds = array<i64: 16, 128>}, {transform_indices = @transform_1, window_bounds = array<i64: 16, 128>}, {transform_indices = @transform_2, window_bounds = array<i64: 16, 128>}, {pipeline_mode = #tpu.pipeline_mode<synchronous>, transform_indices = @transform_3, window_bounds = array<i64: 128, 128>}, {pipeline_mode = #tpu.pipeline_mode<synchronous>, transform_indices = @transform_4, window_bounds = array<i64: 1, 128>}, {pipeline_mode = #tpu.pipeline_mode<synchronous>, transform_indices = @transform_5, window_bounds = array<i64: 128, 128>}, {pipeline_mode = #tpu.pipeline_mode<synchronous>, transform_indices = @transform_6, window_bounds = array<i64: 1, 128>}, {transform_indices = @transform_7, window_bounds = array<i64: 16, 128>}]} {
    %c0 = arith.constant 0 : index
    %c0_0 = arith.constant 0 : index
    %0 = vector.load %arg1[%c0, %c0_0] : memref<16x128xf32, #tpu.memory_space<vmem>>, vector<16x128xf32>
    %c0_1 = arith.constant 0 : index
    %c0_2 = arith.constant 0 : index
    %1 = vector.load %arg2[%c0_1, %c0_2] : memref<16x128xf32, #tpu.memory_space<vmem>>, vector<16x128xf32>
    %c0_3 = arith.constant 0 : index
    %c0_4 = arith.constant 0 : index
    %2 = vector.load %arg3[%c0_3, %c0_4] : memref<16x128xf32, #tpu.memory_space<vmem>>, vector<16x128xf32>
    %3 = tpu.concatenate %0, %1, %2 in 0 : vector<16x128xf32>, vector<16x128xf32>, vector<16x128xf32> -> vector<48x128xf32>
    %c0_5 = arith.constant 0 : index
    %c0_6 = arith.constant 0 : index
    %4 = vector.load %arg4[%c0_5, %c0_6] : memref<128x128xf32, #tpu.memory_space<vmem>>, vector<128x128xf32>
    %cst = arith.constant dense<0.000000e+00> : vector<48x128xf32>
    %5 = tpu.matmul %3, %4, %cst {dimension_numbers = #tpu.dot_dimension_numbers<[1], [0], [0], [1], [0, 0, 1, 1], [], []>} : vector<48x128xf32>, vector<128x128xf32>, vector<48x128xf32> -> vector<48x128xf32>
    %c0_7 = arith.constant 0 : index
    %c0_8 = arith.constant 0 : index
    %6 = vector.load %arg5[%c0_7, %c0_8] : memref<1x128xf32, #tpu.memory_space<vmem>>, vector<1x128xf32>
    %7 = vector.broadcast %6 : vector<1x128xf32> to vector<48x128xf32>
    %8 = arith.addf %5, %7 : vector<48x128xf32>
    %cst_9 = arith.constant 0.000000e+00 : f32
    %9 = vector.broadcast %cst_9 : f32 to vector<48x128xf32>
    %10 = arith.maximumf %8, %9 : vector<48x128xf32>
    %11 = vector.extract_strided_slice %10 {offsets = [0, 0], sizes = [16, 128], strides = [1, 1]} : vector<48x128xf32> to vector<16x128xf32>
    %12 = vector.extract_strided_slice %10 {offsets = [16, 0], sizes = [16, 128], strides = [1, 1]} : vector<48x128xf32> to vector<16x128xf32>
    %13 = arith.addf %11, %12 : vector<16x128xf32>
    %14 = vector.extract_strided_slice %10 {offsets = [32, 0], sizes = [16, 128], strides = [1, 1]} : vector<48x128xf32> to vector<16x128xf32>
    %15 = arith.addf %13, %14 : vector<16x128xf32>
    %c0_10 = arith.constant 0 : index
    %c0_11 = arith.constant 0 : index
    %16 = vector.load %arg6[%c0_10, %c0_11] : memref<128x128xf32, #tpu.memory_space<vmem>>, vector<128x128xf32>
    %cst_12 = arith.constant dense<0.000000e+00> : vector<16x128xf32>
    %17 = tpu.matmul %15, %16, %cst_12 {dimension_numbers = #tpu.dot_dimension_numbers<[1], [0], [0], [1], [0, 0, 1, 1], [], []>} : vector<16x128xf32>, vector<128x128xf32>, vector<16x128xf32> -> vector<16x128xf32>
    %c0_13 = arith.constant 0 : index
    %c0_14 = arith.constant 0 : index
    %18 = vector.load %arg7[%c0_13, %c0_14] : memref<1x128xf32, #tpu.memory_space<vmem>>, vector<1x128xf32>
    %19 = vector.broadcast %18 : vector<1x128xf32> to vector<16x128xf32>
    %20 = arith.addf %17, %19 : vector<16x128xf32>
    %c0_15 = arith.constant 0 : index
    %c0_16 = arith.constant 0 : index
    %21 = vector.load %arg8[%c0_15, %c0_16] : memref<16x128xf32, #tpu.memory_space<vmem>>, vector<16x128xf32>
    tpu.vector_store %arg8[%c0_15, %c0_16], %20 {strides = array<i32>} : memref<16x128xf32, #tpu.memory_space<vmem>>, vector<16x128xf32>,
    return
  }
  func.func @transform_0(%arg0: i32) -> (i32, i32) {
    %c0_i32 = arith.constant 0 : i32
    %c0_i32_0 = arith.constant 0 : i32
    return %arg0, %c0_i32 : i32, i32
  }
  func.func @transform_1(%arg0: i32) -> (i32, i32) {
    %c0_i32 = arith.constant 0 : i32
    %c0_i32_0 = arith.constant 0 : i32
    return %arg0, %c0_i32 : i32, i32
  }
  func.func @transform_2(%arg0: i32) -> (i32, i32) {
    %c0_i32 = arith.constant 0 : i32
    %c0_i32_0 = arith.constant 0 : i32
    return %arg0, %c0_i32 : i32, i32
  }
  func.func @transform_3(%arg0: i32) -> (i32, i32) {
    %c0_i32 = arith.constant 0 : i32
    %c0_i32_0 = arith.constant 0 : i32
    %c0_i32_1 = arith.constant 0 : i32
    return %c0_i32, %c0_i32_0 : i32, i32
  }
  func.func @transform_4(%arg0: i32) -> (i32, i32) {
    %c0_i32 = arith.constant 0 : i32
    %c0_i32_0 = arith.constant 0 : i32
    %c0_i32_1 = arith.constant 0 : i32
    return %c0_i32, %c0_i32_0 : i32, i32
  }
  func.func @transform_5(%arg0: i32) -> (i32, i32) {
    %c0_i32 = arith.constant 0 : i32
    %c0_i32_0 = arith.constant 0 : i32
    %c0_i32_1 = arith.constant 0 : i32
    return %c0_i32, %c0_i32_0 : i32, i32
  }
  func.func @transform_6(%arg0: i32) -> (i32, i32) {
    %c0_i32 = arith.constant 0 : i32
    %c0_i32_0 = arith.constant 0 : i32
    %c0_i32_1 = arith.constant 0 : i32
    return %c0_i32, %c0_i32_0 : i32, i32
  }
  func.func @transform_7(%arg0: i32) -> (i32, i32) {
    %c0_i32 = arith.constant 0 : i32
    %c0_i32_0 = arith.constant 0 : i32
    return %arg0, %c0_i32 : i32, i32
  }
}

</mosaic_0001>

<llo_original>
// kernel: mlp_module_forward.1
$region0: #{mlp_module_forward.1}
  #allocation0 [shape = 'u32[]', space=smem, size = 0x4, offset = 0x4, fixed_abs, tag = 'smem constant byte address 0x4 - core index']
  #allocation1 [shape = 'u32[144,128]{1,0:T(1,128)}', space=vmem, size = 0x12000, scoped, tag = 'internal scratch']
  %s0 = inlined_call_operand.vmem [shape: f32[16,128], index: 0, kind: input, shape index: {}]
  %s1 = inlined_call_operand.vmem [shape: f32[16,128], index: 1, kind: input, shape index: {}]
  %s2 = inlined_call_operand.vmem [shape: f32[16,128], index: 2, kind: input, shape index: {}]
  %s3 = inlined_call_operand.vmem [shape: f32[128,128], index: 3, kind: input, shape index: {}]
  %s4 = inlined_call_operand.vmem [shape: f32[1,128], index: 4, kind: input, shape index: {}]
  %s5 = inlined_call_operand.vmem [shape: f32[128,128], index: 5, kind: input, shape index: {}]
  %s6 = inlined_call_operand.vmem [shape: f32[1,128], index: 6, kind: input, shape index: {}]
  %s7 = inlined_call_operand.vmem [shape: f32[16,128], index: 7, kind: output, shape index: {}]
  %s8 = sld [smem:[#allocation0]]
  $region38: #{mlp_module_forward.1} parent=0
    _
  %s10 = ssub.s32 1, %s8
  %s11 = scalar_select 0, %s10, %s8
  // Predicated region
  $region2: #{mlp_module_forward.1} parent=0 // pred_check
    _
  $region3: #{mlp_module_forward.1} parent=0 // pred_check_branch
    %13 = sbr.rel (0) target = $region5
  $region4: #{mlp_module_forward.1} parent=0 // pred_region
    _
  $region5: #{mlp_module_forward.1} parent=0 // pred_fallthru
    _
  // Predicated region
  $region6: #{mlp_module_forward.1} parent=0 // pred_check
    _
  $region7: #{mlp_module_forward.1} parent=0 // pred_check_branch
    %15 = sbr.rel (0) target = $region9
  $region8: #{mlp_module_forward.1} parent=0 // pred_region
    _
  $region9: #{mlp_module_forward.1} parent=0 // pred_fallthru
    _
  // Predicated region
  $region10: #{mlp_module_forward.1} parent=0 // pred_check
    _
  $region11: #{mlp_module_forward.1} parent=0 // pred_check_branch
    %17 = sbr.rel (0) target = $region13
  $region12: #{mlp_module_forward.1} parent=0 // pred_region
    _
  $region13: #{mlp_module_forward.1} parent=0 // pred_fallthru
    _
  // Predicated region
  $region14: #{mlp_module_forward.1} parent=0 // pred_check
    _
  $region15: #{mlp_module_forward.1} parent=0 // pred_check_branch
    %19 = sbr.rel (0) target = $region17
  $region16: #{mlp_module_forward.1} parent=0 // pred_region
    _
  $region17: #{mlp_module_forward.1} parent=0 // pred_fallthru
    _
  // Predicated region
  $region18: #{mlp_module_forward.1} parent=0 // pred_check
    _
  $region19: #{mlp_module_forward.1} parent=0 // pred_check_branch
    %21 = sbr.rel (0) target = $region21
  $region20: #{mlp_module_forward.1} parent=0 // pred_region
    _
  $region21: #{mlp_module_forward.1} parent=0 // pred_fallthru
    _
  // Predicated region
  $region22: #{mlp_module_forward.1} parent=0 // pred_check
    _
  $region23: #{mlp_module_forward.1} parent=0 // pred_check_branch
    %23 = sbr.rel (0) target = $region25
  $region24: #{mlp_module_forward.1} parent=0 // pred_region
    _
  $region25: #{mlp_module_forward.1} parent=0 // pred_fallthru
    _
  // Predicated region
  $region26: #{mlp_module_forward.1} parent=0 // pred_check
    _
  $region27: #{mlp_module_forward.1} parent=0 // pred_check_branch
    %25 = sbr.rel (0) target = $region29
  $region28: #{mlp_module_forward.1} parent=0 // pred_region
    _
  $region29: #{mlp_module_forward.1} parent=0 // pred_fallthru
    _
  %v26 = vld [vmem:[%s0] sm:$0xff]
  %v27 = vld [vmem:[%s0 + $0x8] sm:$0xff]
  %v28 = vld [vmem:[%s1] sm:$0xff]
  %v29 = vld [vmem:[%s1 + $0x8] sm:$0xff]
  %v30 = vld [vmem:[%s2] sm:$0xff]
  %v31 = vld [vmem:[%s2 + $0x8] sm:$0xff]
  %v32 = vld [vmem:[%s3] sm:$0xff]
  %v33 = vld [vmem:[%s3 + $0x8] sm:$0xff]
  %v34 = vld [vmem:[%s3 + $0x10] sm:$0xff]
  %v35 = vld [vmem:[%s3 + $0x18] sm:$0xff]
  %v36 = vld [vmem:[%s3 + $0x20] sm:$0xff]
  %v37 = vld [vmem:[%s3 + $0x28] sm:$0xff]
  %v38 = vld [vmem:[%s3 + $0x30] sm:$0xff]
  %v39 = vld [vmem:[%s3 + $0x38] sm:$0xff]
  %v40 = vld [vmem:[%s3 + $0x40] sm:$0xff]
  %v41 = vld [vmem:[%s3 + $0x48] sm:$0xff]
  %v42 = vld [vmem:[%s3 + $0x50] sm:$0xff]
  %v43 = vld [vmem:[%s3 + $0x58] sm:$0xff]
  %v44 = vld [vmem:[%s3 + $0x60] sm:$0xff]
  %v45 = vld [vmem:[%s3 + $0x68] sm:$0xff]
  %v46 = vld [vmem:[%s3 + $0x70] sm:$0xff]
  %v47 = vld [vmem:[%s3 + $0x78] sm:$0xff]
  %v48 = vld [vmem:[%s4] sm:$0x1]
  %v50 = vlaneseq
  %v51 = vshrl.u32 %v50, 7
  %v52 = vsub.s32 0, %v51
  %v53 = vrot.slane %v48, %v52
  %55 = vmatprep.subr.mxu0 0.0
  %56 = vmatpush1.msra.mxu0 %v32
  %57 = vmatprep.subr.mxu0 0.0
  %58 = vmatpush1.msra.mxu0 %v33
  %59 = vmatprep.subr.mxu0 0.0
  %60 = vmatpush1.msra.mxu0 %v34
  %61 = vmatprep.subr.mxu0 0.0
  %62 = vmatpush1.msra.mxu0 %v35
  %63 = vmatprep.subr.mxu0 0.0
  %64 = vmatpush1.msra.mxu0 %v36
  %65 = vmatprep.subr.mxu0 0.0
  %66 = vmatpush1.msra.mxu0 %v37
  %67 = vmatprep.subr.mxu0 0.0
  %68 = vmatpush1.msra.mxu0 %v38
  %69 = vmatprep.subr.mxu0 0.0
  %70 = vmatpush1.msra.mxu0 %v39
  %71 = vmatprep.subr.mxu0 0.0
  %72 = vmatpush1.msra.mxu0 %v40
  %73 = vmatprep.subr.mxu0 0.0
  %74 = vmatpush1.msra.mxu0 %v41
  %75 = vmatprep.subr.mxu0 0.0
  %76 = vmatpush1.msra.mxu0 %v42
  %77 = vmatprep.subr.mxu0 0.0
  %78 = vmatpush1.msra.mxu0 %v43
  %79 = vmatprep.subr.mxu0 0.0
  %80 = vmatpush1.msra.mxu0 %v44
  %81 = vmatprep.subr.mxu0 0.0
  %82 = vmatpush1.msra.mxu0 %v45
  %83 = vmatprep.subr.mxu0 0.0
  %84 = vmatpush1.msra.mxu0 %v46
  %85 = vmatprep.subr.mxu0 0.0
  %86 = vmatpush1.msra.mxu0 %v47
  %87 = vmatprep.subr.mxu0 0.0
  %88 = vmatpush1.msra.mxu0 0.0
  %89 = vmatprep.subr.mxu0 0.0
  %90 = vmatpush1.msra.mxu0 0.0
  %91 = vmatprep.subr.mxu0 0.0
  %92 = vmatpush1.msra.mxu0 0.0
  %93 = vmatprep.subr.mxu0 0.0
  %94 = vmatpush1.msra.mxu0 0.0
  %95 = vmatprep.subr.mxu0 0.0
  %96 = vmatpush1.msra.mxu0 0.0
  %97 = vmatprep.subr.mxu0 0.0
  %98 = vmatpush1.msra.mxu0 0.0
  %99 = vmatprep.subr.mxu0 0.0
  %100 = vmatpush1.msra.mxu0 0.0
  %101 = vmatprep.subr.mxu0 0.0
  %102 = vmatpush1.msra.mxu0 0.0
  %103 = vmatprep.subr.mxu0 0.0
  %104 = vmatpush1.msra.mxu0 0.0
  %105 = vmatprep.subr.mxu0 0.0
  %106 = vmatpush1.msra.mxu0 0.0
  %107 = vmatprep.subr.mxu0 0.0
  %108 = vmatpush1.msra.mxu0 0.0
  %109 = vmatprep.subr.mxu0 0.0
  %110 = vmatpush1.msra.mxu0 0.0
  %111 = vmatprep.subr.mxu0 0.0
  %112 = vmatpush1.msra.mxu0 0.0
  %113 = vmatprep.subr.mxu0 0.0
  %114 = vmatpush1.msra.mxu0 0.0
  %115 = vmatprep.subr.mxu0 0.0
  %116 = vmatpush1.msra.mxu0 0.0
  %117 = vmatprep.subr.mxu0 0.0
  %118 = vmatpush1.msra.mxu0 0.0
  %119 = vmatprep.mubr.f32.mxu0 0.0
  %120 = vmatmul.mubr.f32.gmra.mrb[0].mxu0 %v26
  %v121 = vpop.f32.mrb[0].mxu0
  %v122 = vadd.f32 %v53, %v121
  %v123 = vpop.f32.mrb[0].mxu0
  %124 = vmatprep.mubr.f32.mxu0 0.0
  %125 = vmatmul.mubr.f32.gmra.mrb[0].mxu0 %v27
  %v126 = vpop.f32.mrb[0].mxu0
  %v127 = vadd.f32 %v53, %v126
  %v128 = vpop.f32.mrb[0].mxu0
  %129 = vmatprep.mubr.f32.mxu0 0.0
  %130 = vmatmul.mubr.f32.gmra.mrb[0].mxu0 %v28
  %v131 = vpop.f32.mrb[0].mxu0
  %v132 = vadd.f32 %v53, %v131
  %v133 = vpop.f32.mrb[0].mxu0
  %134 = vmatprep.mubr.f32.mxu0 0.0
  %135 = vmatmul.mubr.f32.gmra.mrb[0].mxu0 %v29
  %v136 = vpop.f32.mrb[0].mxu0
  %v137 = vadd.f32 %v53, %v136
  %v138 = vpop.f32.mrb[0].mxu0
  %139 = vmatprep.mubr.f32.mxu0 0.0
  %140 = vmatmul.mubr.f32.gmra.mrb[0].mxu0 %v30
  %v141 = vpop.f32.mrb[0].mxu0
  %v142 = vadd.f32 %v53, %v141
  %v143 = vpop.f32.mrb[0].mxu0
  %144 = vmatprep.mubr.f32.mxu0 0.0
  %145 = vmatmul.mubr.f32.gmra.mrb[0].mxu0 %v31
  %v146 = vpop.f32.mrb[0].mxu0
  %v147 = vadd.f32 %v53, %v146
  %v148 = vpop.f32.mrb[0].mxu0
  %149 = vdwg.mxu0
  %v150 = vmax.f32 %v122, 0.0
  %v151 = vmax.f32 %v127, 0.0
  %v152 = vmax.f32 %v132, 0.0
  %v153 = vmax.f32 %v137, 0.0
  %v154 = vmax.f32 %v142, 0.0
  %v155 = vmax.f32 %v147, 0.0
  %v156 = vadd.f32 %v150, %v152
  %v157 = vadd.f32 %v151, %v153
  %v158 = vadd.f32 %v156, %v154
  %v159 = vadd.f32 %v157, %v155
  %v160 = vld [vmem:[%s5] sm:$0xff]
  %v161 = vld [vmem:[%s5 + $0x8] sm:$0xff]
  %v162 = vld [vmem:[%s5 + $0x10] sm:$0xff]
  %v163 = vld [vmem:[%s5 + $0x18] sm:$0xff]
  %v164 = vld [vmem:[%s5 + $0x20] sm:$0xff]
  %v165 = vld [vmem:[%s5 + $0x28] sm:$0xff]
  %v166 = vld [vmem:[%s5 + $0x30] sm:$0xff]
  %v167 = vld [vmem:[%s5 + $0x38] sm:$0xff]
  %v168 = vld [vmem:[%s5 + $0x40] sm:$0xff]
  %v169 = vld [vmem:[%s5 + $0x48] sm:$0xff]
  %v170 = vld [vmem:[%s5 + $0x50] sm:$0xff]
  %v171 = vld [vmem:[%s5 + $0x58] sm:$0xff]
  %v172 = vld [vmem:[%s5 + $0x60] sm:$0xff]
  %v173 = vld [vmem:[%s5 + $0x68] sm:$0xff]
  %v174 = vld [vmem:[%s5 + $0x70] sm:$0xff]
  %v175 = vld [vmem:[%s5 + $0x78] sm:$0xff]
  %v176 = vld [vmem:[%s6] sm:$0x1]
  %v178 = vlaneseq
  %v179 = vshrl.u32 %v178, 7
  %v180 = vsub.s32 0, %v179
  %v181 = vrot.slane %v176, %v180
  %183 = vmatprep.subr.mxu0 0.0
  %184 = vmatpush1.msra.mxu0 %v160
  %185 = vmatprep.subr.mxu0 0.0
  %186 = vmatpush1.msra.mxu0 %v161
  %187 = vmatprep.subr.mxu0 0.0
  %188 = vmatpush1.msra.mxu0 %v162
  %189 = vmatprep.subr.mxu0 0.0
  %190 = vmatpush1.msra.mxu0 %v163
  %191 = vmatprep.subr.mxu0 0.0
  %192 = vmatpush1.msra.mxu0 %v164
  %193 = vmatprep.subr.mxu0 0.0
  %194 = vmatpush1.msra.mxu0 %v165
  %195 = vmatprep.subr.mxu0 0.0
  %196 = vmatpush1.msra.mxu0 %v166
  %197 = vmatprep.subr.mxu0 0.0
  %198 = vmatpush1.msra.mxu0 %v167
  %199 = vmatprep.subr.mxu0 0.0
  %200 = vmatpush1.msra.mxu0 %v168
  %201 = vmatprep.subr.mxu0 0.0
  %202 = vmatpush1.msra.mxu0 %v169
  %203 = vmatprep.subr.mxu0 0.0
  %204 = vmatpush1.msra.mxu0 %v170
  %205 = vmatprep.subr.mxu0 0.0
  %206 = vmatpush1.msra.mxu0 %v171
  %207 = vmatprep.subr.mxu0 0.0
  %208 = vmatpush1.msra.mxu0 %v172
  %209 = vmatprep.subr.mxu0 0.0
  %210 = vmatpush1.msra.mxu0 %v173
  %211 = vmatprep.subr.mxu0 0.0
  %212 = vmatpush1.msra.mxu0 %v174
  %213 = vmatprep.subr.mxu0 0.0
  %214 = vmatpush1.msra.mxu0 %v175
  %215 = vmatprep.subr.mxu0 0.0
  %216 = vmatpush1.msra.mxu0 0.0
  %217 = vmatprep.subr.mxu0 0.0
  %218 = vmatpush1.msra.mxu0 0.0
  %219 = vmatprep.subr.mxu0 0.0
  %220 = vmatpush1.msra.mxu0 0.0
  %221 = vmatprep.subr.mxu0 0.0
  %222 = vmatpush1.msra.mxu0 0.0
  %223 = vmatprep.subr.mxu0 0.0
  %224 = vmatpush1.msra.mxu0 0.0
  %225 = vmatprep.subr.mxu0 0.0
  %226 = vmatpush1.msra.mxu0 0.0
  %227 = vmatprep.subr.mxu0 0.0
  %228 = vmatpush1.msra.mxu0 0.0
  %229 = vmatprep.subr.mxu0 0.0
  %230 = vmatpush1.msra.mxu0 0.0
  %231 = vmatprep.subr.mxu0 0.0
  %232 = vmatpush1.msra.mxu0 0.0
  %233 = vmatprep.subr.mxu0 0.0
  %234 = vmatpush1.msra.mxu0 0.0
  %235 = vmatprep.subr.mxu0 0.0
  %236 = vmatpush1.msra.mxu0 0.0
  %237 = vmatprep.subr.mxu0 0.0
  %238 = vmatpush1.msra.mxu0 0.0
  %239 = vmatprep.subr.mxu0 0.0
  %240 = vmatpush1.msra.mxu0 0.0
  %241 = vmatprep.subr.mxu0 0.0
  %242 = vmatpush1.msra.mxu0 0.0
  %243 = vmatprep.subr.mxu0 0.0
  %244 = vmatpush1.msra.mxu0 0.0
  %245 = vmatprep.subr.mxu0 0.0
  %246 = vmatpush1.msra.mxu0 0.0
  %247 = vmatprep.mubr.f32.mxu0 0.0
  %248 = vmatmul.mubr.f32.gmra.mrb[0].mxu0 %v158
  %v249 = vpop.f32.mrb[0].mxu0
  %v250 = vadd.f32 %v181, %v249
  %v251 = vpop.f32.mrb[0].mxu0
  %252 = vmatprep.mubr.f32.mxu0 0.0
  %253 = vmatmul.mubr.f32.gmra.mrb[0].mxu0 %v159
  %v254 = vpop.f32.mrb[0].mxu0
  %v255 = vadd.f32 %v181, %v254
  %v256 = vpop.f32.mrb[0].mxu0
  %257 = vdwg.mxu0
  %258 = vst [vmem:[%s7] sm:$0xff] %v250
  %259 = vst [vmem:[%s7 + $0x8] sm:$0xff] %v255
  // Predicated region
  $region30: #{mlp_module_forward.1} parent=0 // pred_check
    _
  $region31: #{mlp_module_forward.1} parent=0 // pred_check_branch
    %261 = sbr.rel (0) target = $region33
  $region32: #{mlp_module_forward.1} parent=0 // pred_region
    _
  $region33: #{mlp_module_forward.1} parent=0 // pred_fallthru
    _
  // Predicated region
  $region34: #{mlp_module_forward.1} parent=0 // pred_check
    _
  $region35: #{mlp_module_forward.1} parent=0 // pred_check_branch
    %263 = sbr.rel (0) target = $region37
  $region36: #{mlp_module_forward.1} parent=0 // pred_region
    _
  $region37: #{mlp_module_forward.1} parent=0 // pred_fallthru
    _

</llo_original>
